<compile_context>
chip_gen: v5e
topology: v5e:2x2
jax: 0.10.0
libtpu: 0.0.40
codegen_flags: <defaults>
</compile_context>

<pallas_src>
import functools

import jax
import jax.numpy as jnp
from jax.experimental import pallas as pl
from jax.experimental.pallas import tpu as pltpu


_VMEM_LIMIT = 48 * 1024 * 1024       # scoped-VMEM request (v7x-safe, helps v5e/v6e)
_S_RESIDENT_BYTES = 8 * 1024 * 1024  # keep S resident in aggregation below this size


def _round_up(x, m):
    return ((x + m - 1) // m) * m


def _choose_tiles(n):
    """Row tile (M), reduction tile (K) and padded N for the N x N adjacency."""
    n128 = _round_up(max(n, 1), 128)
    tile_m = 256 if n128 >= 512 else 128
    n_pad = _round_up(max(n, 1), tile_m)
    tile_k = 128
    for cand in (2048, 1024, 512, 256, 128):
        if n_pad % cand == 0:
            tile_k = cand
            break
    return n_pad, tile_m, tile_k


# ---------------------------------------------------------------------------
# Pallas kernels
# ---------------------------------------------------------------------------
def _dinv_kernel(a_ref, dinv_ref):
    """dinv = D^{-1/2} from row sums of the (masked, int8) adjacency; deg==0 -> 0."""
    k = pl.program_id(1)

    @pl.when(k == 0)
    def _():
        dinv_ref[...] = jnp.zeros_like(dinv_ref)

    dinv_ref[...] += jnp.sum(a_ref[...].astype(jnp.float32), axis=1, keepdims=True)

    @pl.when(k == pl.num_programs(1) - 1)
    def _():
        d = dinv_ref[...]
        dinv_ref[...] = jnp.where(d > 0.0, jax.lax.rsqrt(d), 0.0)


def _xw_kernel(h_ref, w_ref, dinv_ref, s_ref):
    """S = D^{-1/2} (H @ W) (row-scaled), emitted as bf16 for the MXU aggregation."""
    xw = jnp.dot(h_ref[...], w_ref[...], preferred_element_type=jnp.float32)
    s_ref[...] = (xw * dinv_ref[...]).astype(s_ref.dtype)


def _aggregate_kernel(*refs, apply_relu, has_mask, s_resident, tile_k):
    """out = [dropout][relu]( D^{-1/2} (A @ S) + b ), tiled over a (row, k) grid.

    A arrives as int8 and is cast to bf16 in VMEM.  S is either fully resident
    (sliced per K step) or streamed per K tile.  Dropout is a precomputed bf16
    keep/scale mask fused into the epilogue.
    """
    if has_mask:
        a_ref, s_ref, dinv_ref, b_ref, mask_ref, o_ref, acc_ref = refs
    else:
        a_ref, s_ref, dinv_ref, b_ref, o_ref, acc_ref = refs
        mask_ref = None

    k = pl.program_id(1)

    @pl.when(k == 0)
    def _():
        acc_ref[...] = jnp.zeros_like(acc_ref)

    a_blk = a_ref[...].astype(jnp.bfloat16)
    if s_resident:
        s_blk = s_ref[pl.ds(k * tile_k, tile_k), :]
    else:
        s_blk = s_ref[...]
    acc_ref[...] += jnp.dot(a_blk, s_blk, preferred_element_type=jnp.float32)

    @pl.when(k == pl.num_programs(1) - 1)
    def _():
        out = acc_ref[...] * dinv_ref[...] + b_ref[...]
        if apply_relu:
            out = jnp.maximum(out, 0.0)
        if mask_ref is not None:
            out = out * mask_ref[...].astype(jnp.float32)
        o_ref[...] = out.astype(o_ref.dtype)


def _decode_kernel(src_ref, dst_ref, o_ref):
    """scores = sum(src * dst, axis=-1); bf16 inputs, f32 accumulation, lane-dense out."""
    prod = src_ref[...].astype(jnp.float32) * dst_ref[...].astype(jnp.float32)
    o_ref[...] = jnp.sum(prod, axis=-1)


# ---------------------------------------------------------------------------
# Wrappers
# ---------------------------------------------------------------------------
def compute_dinv(adj_i8, tile_m, tile_k):
    n_pad = adj_i8.shape[0]
    return pl.pallas_call(
        _dinv_kernel,
        out_shape=jax.ShapeDtypeStruct((n_pad, 1), jnp.float32),
        grid=(n_pad // tile_m, n_pad // tile_k),
        in_specs=[pl.BlockSpec((tile_m, tile_k), lambda i, k: (i, k))],
        out_specs=pl.BlockSpec((tile_m, 1), lambda i, k: (i, 0)),
        compiler_params=pltpu.CompilerParams(
            dimension_semantics=("parallel", "arbitrary"),
            vmem_limit_bytes=_VMEM_LIMIT),
    )(adj_i8)


def xw_scale(h_bf16, w_pad, dinv, tile_m):
    # NOTE: C_in is kept un-tiled (typical GCN feature dims fit VMEM comfortably).
    n_pad, cin_pad = h_bf16.shape
    cout_pad = w_pad.shape[1]
    return pl.pallas_call(
        _xw_kernel,
        out_shape=jax.ShapeDtypeStruct((n_pad, cout_pad), jnp.bfloat16),
        grid=(n_pad // tile_m,),
        in_specs=[pl.BlockSpec((tile_m, cin_pad), lambda i: (i, 0)),
                  pl.BlockSpec((cin_pad, cout_pad), lambda i: (0, 0)),  # W resident
                  pl.BlockSpec((tile_m, 1), lambda i: (i, 0))],
        out_specs=pl.BlockSpec((tile_m, cout_pad), lambda i: (i, 0)),
        compiler_params=pltpu.CompilerParams(
            dimension_semantics=("parallel",),
            vmem_limit_bytes=_VMEM_LIMIT),
    )(h_bf16, w_pad, dinv)


def aggregate(adj_i8, s, dinv, b_pad, drop_mask, *, apply_relu, out_dtype,
              tile_m, tile_k):
    n_pad = adj_i8.shape[0]
    cout_pad = s.shape[1]
    s_resident = (s.size * 2) <= _S_RESIDENT_BYTES  # s is bf16
    has_mask = drop_mask is not None

    kernel = functools.partial(_aggregate_kernel, apply_relu=apply_relu,
                               has_mask=has_mask, s_resident=s_resident,
                               tile_k=tile_k)

    if s_resident:
        s_spec = pl.BlockSpec((n_pad, cout_pad), lambda i, k: (0, 0))     # resident
    else:
        s_spec = pl.BlockSpec((tile_k, cout_pad), lambda i, k: (k, 0))    # streamed

    in_specs = [pl.BlockSpec((tile_m, tile_k), lambda i, k: (i, k)),      # A tile (int8)
                s_spec,
                pl.BlockSpec((tile_m, 1), lambda i, k: (i, 0)),           # dinv rows
                pl.BlockSpec((1, cout_pad), lambda i, k: (0, 0))]         # bias resident
    args = [adj_i8, s, dinv, b_pad]
    if has_mask:
        in_specs.append(pl.BlockSpec((tile_m, cout_pad), lambda i, k: (i, 0)))
        args.append(drop_mask)

    return pl.pallas_call(
        kernel,
        out_shape=jax.ShapeDtypeStruct((n_pad, cout_pad), out_dtype),
        grid=(n_pad // tile_m, n_pad // tile_k),
        in_specs=in_specs,
        out_specs=pl.BlockSpec((tile_m, cout_pad), lambda i, k: (i, 0)),
        scratch_shapes=[pltpu.VMEM((tile_m, cout_pad), jnp.float32)],
        compiler_params=pltpu.CompilerParams(
            dimension_semantics=("parallel", "arbitrary"),
            vmem_limit_bytes=_VMEM_LIMIT),
    )(*args)


def decode_scores(src, dst, num_edges):
    e_pad, c_pad = src.shape                 # e_pad is a multiple of 1024
    rows = e_pad // 128
    block_rows = 32 if rows % 32 == 0 else (16 if rows % 16 == 0 else 8)
    src3 = src.reshape(rows, 128, c_pad)
    dst3 = dst.reshape(rows, 128, c_pad)
    out = pl.pallas_call(
        _decode_kernel,
        out_shape=jax.ShapeDtypeStruct((rows, 128), jnp.float32),
        grid=(rows // block_rows,),
        in_specs=[pl.BlockSpec((block_rows, 128, c_pad), lambda e: (e, 0, 0)),
                  pl.BlockSpec((block_rows, 128, c_pad), lambda e: (e, 0, 0))],
        out_specs=pl.BlockSpec((block_rows, 128), lambda e: (e, 0)),
        compiler_params=pltpu.CompilerParams(
            dimension_semantics=("parallel",),
            vmem_limit_bytes=_VMEM_LIMIT),
    )(src3, dst3)
    return out.reshape(-1)[:num_edges]


# ---------------------------------------------------------------------------
# GCN_LP model
# ---------------------------------------------------------------------------
class GCNLPPallas:
    def __init__(self, in_channels, hidden_channels, out_channels, dropout,
                 layer_num, normalize, drop_prob, param_key):
        # TODO(synk): the reference GCNLayer class is not provided; it is assumed to
        # compute `A_norm @ (X @ W) + b` (no activation); the `normalize` flag is
        # carried but has no additional per-layer effect here.
        self.dropout = float(dropout)
        self.drop_prob = float(drop_prob)
        self.normalize = normalize

        dims = [in_channels] + [hidden_channels] * (layer_num - 1) + [out_channels]
        self.dims = dims
        self.params = []
        key = param_key
        for i in range(layer_num):
            key, kw = jax.random.split(key)
            fan_in, fan_out = dims[i], dims[i + 1]
            fi_pad, fo_pad = _round_up(fan_in, 128), _round_up(fan_out, 128)
            scale = jnp.sqrt(2.0 / (fan_in + fan_out)).astype(jnp.float32)
            w = scale * jax.random.normal(kw, (fan_in, fan_out), dtype=jnp.float32)
            # Zero-padded to 128-multiples: padded rows/cols contribute exactly zero,
            # so the padded network is numerically identical on the real slice.
            # Weights are pre-cast to bf16 once (MXU operand dtype).
            w_pad = (jnp.zeros((fi_pad, fo_pad), jnp.bfloat16)
                     .at[:fan_in, :fan_out].set(w.astype(jnp.bfloat16)))
            b_pad = jnp.zeros((1, fo_pad), jnp.float32)
            self.params.append((w_pad, b_pad))

    def encode(self, x, edge_index, rng_key):
        n, c_in = x.shape
        n_pad, tile_m, tile_k = _choose_tiles(n)
        c_in_pad = _round_up(c_in, 128)

        # Dense adjacency scatter + self loops (plain-JAX glue). Padded rows/cols stay 0.
        adj = jnp.zeros((n_pad, n_pad), jnp.float32)
        adj = adj.at[edge_index[0], edge_index[1]].set(1.0)
        adj = adj.at[jnp.arange(n), jnp.arange(n)].add(1.0)

        # drop_edge: Bernoulli keep-mask on the full dense adjacency (incl. self loops),
        # matching the reference.  Stored once as int8 (values {0,1,2} exact) -> the
        # dominant N^2 HBM stream is 4x narrower than f32; kernels cast in VMEM.
        rng_key, k_edge = jax.random.split(rng_key)
        keep = jax.random.uniform(k_edge, (n_pad, n_pad)) > self.drop_prob
        adj_i8 = jnp.where(keep, adj, 0.0).astype(jnp.int8)

        # D^{-1/2} as an (N,1) vector; A_norm itself is never materialized.
        dinv = compute_dinv(adj_i8, tile_m, tile_k)

        h = jnp.zeros((n_pad, c_in_pad), jnp.float32)
        h = h.at[:n, :c_in].set(x.astype(jnp.float32))
        h = h.astype(jnp.bfloat16)   # bf16 activations end-to-end (f32 accumulation)

        num_layers = len(self.params)
        for i, (w_pad, b_pad) in enumerate(self.params):
            not_last = i < num_layers - 1
            cout_pad = w_pad.shape[1]
            s = xw_scale(h, w_pad, dinv, tile_m)          # D^{-1/2} (H W), bf16

            if not_last and self.dropout > 0.0:
                rng_key, k_drop = jax.random.split(rng_key)
                keep_f = jax.random.bernoulli(
                    k_drop, 1.0 - self.dropout, (n_pad, cout_pad)).astype(jnp.float32)
                drop_mask = (keep_f * (1.0 / (1.0 - self.dropout))).astype(jnp.bfloat16)
            else:
                drop_mask = None

            h = aggregate(adj_i8, s, dinv, b_pad, drop_mask,
                          apply_relu=not_last,
                          out_dtype=jnp.bfloat16 if not_last else jnp.float32,
                          tile_m=tile_m, tile_k=tile_k)
        return h  # (n_pad, c_out_pad) f32; padded rows/cols unused by the decoder

    def decode(self, z_pad, edge_label_index):
        e = edge_label_index.shape[1]
        e_pad = _round_up(e, 1024)
        src_idx = jnp.zeros((e_pad,), jnp.int32).at[:e].set(edge_label_index[0])
        dst_idx = jnp.zeros((e_pad,), jnp.int32).at[:e].set(edge_label_index[1])
        z_bf = z_pad.astype(jnp.bfloat16)   # halve decoder HBM read
        src = z_bf[src_idx]                 # row gathers are plain-JAX glue
        dst = z_bf[dst_idx]
        return decode_scores(src, dst, e)

    def forward(self, x, edge_index, edge_label_index, rng_key):
        z = self.encode(x, edge_index, rng_key)
        return self.decode(z, edge_label_index)


# ---------------------------------------------------------------------------
# Demo
# ---------------------------------------------------------------------------
if __name__ == "__main__":
    num_nodes = 64
    in_channels = 16
    hidden_channels = 32
    out_channels = 16
    layer_num = 3
    dropout = 0.1
    drop_prob = 0.1
    num_edges = 128
    num_label_edges = 32

    root = jax.random.PRNGKey(0)
    k_x, k_e, k_le, k_params, k_fwd = jax.random.split(root, 5)

    x = jax.random.normal(k_x, (num_nodes, in_channels), dtype=jnp.float32)
    edge_index = jax.random.randint(k_e, (2, num_edges), 0, num_nodes, dtype=jnp.int32)
    edge_label_index = jax.random.randint(
        k_le, (2, num_label_edges), 0, num_nodes, dtype=jnp.int32)

    model = GCNLPPallas(in_channels, hidden_channels, out_channels, dropout,
                        layer_num, normalize=True, drop_prob=drop_prob,
                        param_key=k_params)

    scores = model.forward(x, edge_index, edge_label_index, k_fwd)
    scores = jax.block_until_ready(scores)
    assert scores.shape == (num_label_edges,)
    assert jnp.all(jnp.isfinite(scores))
    print("KERNEL_OK")
</pallas_src>

<mosaic_0001>
module attributes {stable_mosaic.version = 11 : i64} {
  func.func @_dinv_kernel(%arg0: i32, %arg1: i32, %arg2: memref<128x128xi8, #tpu.memory_space<vmem>>, %arg3: memref<128x1xf32, #tpu.memory_space<vmem>>) attributes {dimension_semantics = [#tpu.dimension_semantics<parallel>, #tpu.dimension_semantics<arbitrary>], iteration_bounds = array<i64: 1, 1>, scalar_prefetch = 0 : i64, scratch_operands = 0 : i64, tpu.core_type = #tpu.core_type<tc>, window_params = [{transform_indices = @transform_0, window_bounds = array<i64: 128, 128>}, {transform_indices = @transform_1, window_bounds = array<i64: 128, 1>}]} {
    %c0_i32 = arith.constant 0 : i32
    %0 = arith.cmpi eq, %arg1, %c0_i32 : i32
    %1 = arith.extui %0 : i1 to i32
    %c0_i32_0 = arith.constant 0 : i32
    %2 = arith.cmpi ne, %1, %c0_i32_0 : i32
    scf.if %2 {
      %cst_8 = arith.constant 0.000000e+00 : f32
      %13 = vector.broadcast %cst_8 : f32 to vector<128x1xf32>
      %c0_9 = arith.constant 0 : index
      %c0_10 = arith.constant 0 : index
      %14 = vector.load %arg3[%c0_9, %c0_10] : memref<128x1xf32, #tpu.memory_space<vmem>>, vector<128x1xf32>
      tpu.vector_store %arg3[%c0_9, %c0_10], %13 {strides = array<i32>} : memref<128x1xf32, #tpu.memory_space<vmem>>, vector<128x1xf32>,
    } else {
    }
    %c0 = arith.constant 0 : index
    %c0_1 = arith.constant 0 : index
    %3 = vector.load %arg3[%c0, %c0_1] : memref<128x1xf32, #tpu.memory_space<vmem>>, vector<128x1xf32>
    %c0_2 = arith.constant 0 : index
    %c0_3 = arith.constant 0 : index
    %4 = vector.load %arg2[%c0_2, %c0_3] : memref<128x128xi8, #tpu.memory_space<vmem>>, vector<128x128xi8>
    %5 = arith.sitofp %4 : vector<128x128xi8> to vector<128x128xf32>
    %cst = arith.constant dense<0.000000e+00> : vector<128xf32>
    %6 = vector.multi_reduction <add>, %5, %cst [1] : vector<128x128xf32> to vector<128xf32>
    %7 = vector.shape_cast %6 : vector<128xf32> to vector<128x1xf32>
    %8 = arith.addf %3, %7 : vector<128x1xf32>
    %c0_4 = arith.constant 0 : index
    %c0_5 = arith.constant 0 : index
    %9 = vector.load %arg3[%c0_4, %c0_5] : memref<128x1xf32, #tpu.memory_space<vmem>>, vector<128x1xf32>
    tpu.vector_store %arg3[%c0_4, %c0_5], %8 {strides = array<i32>} : memref<128x1xf32, #tpu.memory_space<vmem>>, vector<128x1xf32>,
    %c0_i32_6 = arith.constant 0 : i32
    %10 = arith.cmpi eq, %arg1, %c0_i32_6 : i32
    %11 = arith.extui %10 : i1 to i32
    %c0_i32_7 = arith.constant 0 : i32
    %12 = arith.cmpi ne, %11, %c0_i32_7 : i32
    scf.if %12 {
      %c0_8 = arith.constant 0 : index
      %c0_9 = arith.constant 0 : index
      %13 = vector.load %arg3[%c0_8, %c0_9] : memref<128x1xf32, #tpu.memory_space<vmem>>, vector<128x1xf32>
      %cst_10 = arith.constant 0.000000e+00 : f32
      %14 = vector.broadcast %cst_10 : f32 to vector<128x1xf32>
      %15 = arith.cmpf ogt, %13, %14 : vector<128x1xf32>
      %16 = math.rsqrt %13 : vector<128x1xf32>
      %cst_11 = arith.constant 0.000000e+00 : f32
      %17 = vector.broadcast %cst_11 : f32 to vector<128x1xf32>
      %18 = arith.select %15, %16, %17 : vector<128x1xi1>, vector<128x1xf32>
      %c0_12 = arith.constant 0 : index
      %c0_13 = arith.constant 0 : index
      %19 = vector.load %arg3[%c0_12, %c0_13] : memref<128x1xf32, #tpu.memory_space<vmem>>, vector<128x1xf32>
      tpu.vector_store %arg3[%c0_12, %c0_13], %18 {strides = array<i32>} : memref<128x1xf32, #tpu.memory_space<vmem>>, vector<128x1xf32>,
    } else {
    }
    return
  }
  func.func @transform_0(%arg0: i32, %arg1: i32) -> (i32, i32) {
    %c0_i32 = arith.constant 0 : i32
    return %arg0, %arg1 : i32, i32
  }
  func.func @transform_1(%arg0: i32, %arg1: i32) -> (i32, i32) {
    %c0_i32 = arith.constant 0 : i32
    %c0_i32_0 = arith.constant 0 : i32
    return %arg0, %c0_i32 : i32, i32
  }
}

</mosaic_0001>

<llo_original>
// kernel: tpu_custom_call.1
$region0: #{tpu_custom_call.1}
  #allocation0 [shape = 'u32[]', space=smem, size = 0x4, offset = 0x4, fixed_abs, tag = 'smem constant byte address 0x4 - core index']
  #allocation1 [shape = 'u32[72,128]{1,0:T(1,128)}', space=vmem, size = 0x9000, scoped, tag = 'internal scratch']
  %s0 = inlined_call_operand.hbm [shape: s8[128,128], index: 0, kind: input, shape index: {}]
  %s1 = inlined_call_operand.vmem [shape: f32[128,1], index: 1, kind: output, shape index: {}]
  %s2 = sld [smem:[#allocation0]]
  $region26: #{tpu_custom_call.1} parent=0
    _
  %s4 = ssub.s32 1, %s2
  %s5 = scalar_select 0, %s4, %s2
  $region1: #{tpu_custom_call.1} parent=0
    #allocation2 [shape = 'u8[16384]{0}', space=vmem, size = 0x4000, scoped, tag = 'input window, operand 0, single buffered']
    #allocation3 [shape = 's32[1]{0}', space=sflag, size = 0x4, scoped, tag = 'scoped memory for tpu_custom_call.1']
    %6 = vsyncpa [#allocation3], 0
    // Predicated region
    $region2: #{tpu_custom_call.1} parent=1 // pred_check
      _
    $region3: #{tpu_custom_call.1} parent=1 // pred_check_branch
      %8 = sbr.rel (0) target = $region5
    $region4: #{tpu_custom_call.1} parent=1 // pred_region
      %10 = vsyncadd [#allocation3], 0
      %s11 = sshll.u32 %s0, 4
      %s12 = int_to_ptr.hbm [resolvable:$true] %s11
      %s13 = sshll.u32 [#allocation2], 4
      %s14 = int_to_ptr.vmem [resolvable:$true] %s13
      %19 = dma.hbm_to_vmem [thread:$0]  %s12, 512, %s14, [#allocation3], 128, 128, 8
    $region5: #{tpu_custom_call.1} parent=1 // pred_fallthru
      _
    // Predicated region
    $region6: #{tpu_custom_call.1} parent=1 // pred_check
      _
    $region7: #{tpu_custom_call.1} parent=1 // pred_check_branch
      %21 = sbr.rel (0) target = $region9
    $region8: #{tpu_custom_call.1} parent=1 // pred_region
      %23 = dma.done [#allocation3], 512
    $region9: #{tpu_custom_call.1} parent=1 // pred_fallthru
      _
    %p24 = scmp.eq.s32.totalorder 0, 0
    // Predicated region
    $region10: #{tpu_custom_call.1} parent=1 // pred_check
      %p25 = pneg %p24
    $region11: #{tpu_custom_call.1} parent=1 // pred_check_branch
      %27 = sbr.rel (%p25) target = $region13
    $region12: #{tpu_custom_call.1} parent=1 // pred_region
      %vm28 = vcmask 7168
      %29 = vst.msk [vmem:[%s1] sm:$0xff] %vm28, 0.0
      %30 = vst.msk [vmem:[%s1 + $0x8] sm:$0xff] %vm28, 0.0
      %31 = vst.msk [vmem:[%s1 + $0x10] sm:$0xff] %vm28, 0.0
      %32 = vst.msk [vmem:[%s1 + $0x18] sm:$0xff] %vm28, 0.0
      %33 = vst.msk [vmem:[%s1 + $0x20] sm:$0xff] %vm28, 0.0
      %34 = vst.msk [vmem:[%s1 + $0x28] sm:$0xff] %vm28, 0.0
      %35 = vst.msk [vmem:[%s1 + $0x30] sm:$0xff] %vm28, 0.0
      %36 = vst.msk [vmem:[%s1 + $0x38] sm:$0xff] %vm28, 0.0
      %37 = vst.msk [vmem:[%s1 + $0x40] sm:$0xff] %vm28, 0.0
      %38 = vst.msk [vmem:[%s1 + $0x48] sm:$0xff] %vm28, 0.0
      %39 = vst.msk [vmem:[%s1 + $0x50] sm:$0xff] %vm28, 0.0
      %40 = vst.msk [vmem:[%s1 + $0x58] sm:$0xff] %vm28, 0.0
      %41 = vst.msk [vmem:[%s1 + $0x60] sm:$0xff] %vm28, 0.0
      %42 = vst.msk [vmem:[%s1 + $0x68] sm:$0xff] %vm28, 0.0
      %43 = vst.msk [vmem:[%s1 + $0x70] sm:$0xff] %vm28, 0.0
      %44 = vst.msk [vmem:[%s1 + $0x78] sm:$0xff] %vm28, 0.0
    $region13: #{tpu_custom_call.1} parent=1 // pred_fallthru
      _
    %v45 = vld [vmem:[%s1] sm:$0xff]
    %v46 = vld [vmem:[%s1 + $0x8] sm:$0xff]
    %v47 = vld [vmem:[%s1 + $0x10] sm:$0xff]
    %v48 = vld [vmem:[%s1 + $0x18] sm:$0xff]
    %v49 = vld [vmem:[%s1 + $0x20] sm:$0xff]
    %v50 = vld [vmem:[%s1 + $0x28] sm:$0xff]
    %v51 = vld [vmem:[%s1 + $0x30] sm:$0xff]
    %v52 = vld [vmem:[%s1 + $0x38] sm:$0xff]
    %v53 = vld [vmem:[%s1 + $0x40] sm:$0xff]
    %v54 = vld [vmem:[%s1 + $0x48] sm:$0xff]
    %v55 = vld [vmem:[%s1 + $0x50] sm:$0xff]
    %v56 = vld [vmem:[%s1 + $0x58] sm:$0xff]
    %v57 = vld [vmem:[%s1 + $0x60] sm:$0xff]
    %v58 = vld [vmem:[%s1 + $0x68] sm:$0xff]
    %v59 = vld [vmem:[%s1 + $0x70] sm:$0xff]
    %v60 = vld [vmem:[%s1 + $0x78] sm:$0xff]
    %v61 = vld [vmem:[#allocation2] sm:$0xff]
    %v62 = vld [vmem:[#allocation2 + $0x8] sm:$0xff]
    %v63 = vld [vmem:[#allocation2 + $0x10] sm:$0xff]
    %v64 = vld [vmem:[#allocation2 + $0x18] sm:$0xff]
    %v65 = vunpack.c.0.s8 %v61
    %v66 = vunpack.c.1.s8 %v61
    %v67 = vunpack.c.2.s8 %v61
    %v68 = vunpack.c.3.s8 %v61
    %v69 = vunpack.c.0.s8 %v62
    %v70 = vunpack.c.1.s8 %v62
    %v71 = vunpack.c.2.s8 %v62
    %v72 = vunpack.c.3.s8 %v62
    %v73 = vunpack.c.0.s8 %v63
    %v74 = vunpack.c.1.s8 %v63
    %v75 = vunpack.c.2.s8 %v63
    %v76 = vunpack.c.3.s8 %v63
    %v77 = vunpack.c.0.s8 %v64
    %v78 = vunpack.c.1.s8 %v64
    %v79 = vunpack.c.2.s8 %v64
    %v80 = vunpack.c.3.s8 %v64
    %v81 = vcvt.s32.f32 %v65
    %v82 = vcvt.s32.f32 %v66
    %v83 = vcvt.s32.f32 %v67
    %v84 = vcvt.s32.f32 %v68
    %v85 = vcvt.s32.f32 %v69
    %v86 = vcvt.s32.f32 %v70
    %v87 = vcvt.s32.f32 %v71
    %v88 = vcvt.s32.f32 %v72
    %v89 = vcvt.s32.f32 %v73
    %v90 = vcvt.s32.f32 %v74
    %v91 = vcvt.s32.f32 %v75
    %v92 = vcvt.s32.f32 %v76
    %v93 = vcvt.s32.f32 %v77
    %v94 = vcvt.s32.f32 %v78
    %v95 = vcvt.s32.f32 %v79
    %v96 = vcvt.s32.f32 %v80
    %97 = vadd.xlane.f32.xlu0 %v81
    %v98 = vpop.xlane.xlu0 %97
    %99 = vadd.xlane.f32.xlu0 %v82
    %v100 = vpop.xlane.xlu0 %99
    %101 = vadd.xlane.f32.xlu0 %v83
    %v102 = vpop.xlane.xlu0 %101
    %103 = vadd.xlane.f32.xlu0 %v84
    %v104 = vpop.xlane.xlu0 %103
    %105 = vadd.xlane.f32.xlu0 %v85
    %v106 = vpop.xlane.xlu0 %105
    %107 = vadd.xlane.f32.xlu0 %v86
    %v108 = vpop.xlane.xlu0 %107
    %109 = vadd.xlane.f32.xlu0 %v87
    %v110 = vpop.xlane.xlu0 %109
    %111 = vadd.xlane.f32.xlu0 %v88
    %v112 = vpop.xlane.xlu0 %111
    %113 = vadd.xlane.f32.xlu0 %v89
    %v114 = vpop.xlane.xlu0 %113
    %115 = vadd.xlane.f32.xlu0 %v90
    %v116 = vpop.xlane.xlu0 %115
    %117 = vadd.xlane.f32.xlu0 %v91
    %v118 = vpop.xlane.xlu0 %117
    %119 = vadd.xlane.f32.xlu0 %v92
    %v120 = vpop.xlane.xlu0 %119
    %121 = vadd.xlane.f32.xlu0 %v93
    %v122 = vpop.xlane.xlu0 %121
    %123 = vadd.xlane.f32.xlu0 %v94
    %v124 = vpop.xlane.xlu0 %123
    %125 = vadd.xlane.f32.xlu0 %v95
    %v126 = vpop.xlane.xlu0 %125
    %127 = vadd.xlane.f32.xlu0 %v96
    %v128 = vpop.xlane.xlu0 %127
    %v129 = vadd.f32 %v45, %v98
    %v130 = vadd.f32 %v46, %v100
    %v131 = vadd.f32 %v47, %v102
    %v132 = vadd.f32 %v48, %v104
    %v133 = vadd.f32 %v49, %v106
    %v134 = vadd.f32 %v50, %v108
    %v135 = vadd.f32 %v51, %v110
    %v136 = vadd.f32 %v52, %v112
    %v137 = vadd.f32 %v53, %v114
    %v138 = vadd.f32 %v54, %v116
    %v139 = vadd.f32 %v55, %v118
    %v140 = vadd.f32 %v56, %v120
    %v141 = vadd.f32 %v57, %v122
    %v142 = vadd.f32 %v58, %v124
    %v143 = vadd.f32 %v59, %v126
    %v144 = vadd.f32 %v60, %v128
    %vm145 = vcmask 7168
    %146 = vst.msk [vmem:[%s1] sm:$0xff] %vm145, %v129
    %147 = vst.msk [vmem:[%s1 + $0x8] sm:$0xff] %vm145, %v130
    %148 = vst.msk [vmem:[%s1 + $0x10] sm:$0xff] %vm145, %v131
    %149 = vst.msk [vmem:[%s1 + $0x18] sm:$0xff] %vm145, %v132
    %150 = vst.msk [vmem:[%s1 + $0x20] sm:$0xff] %vm145, %v133
    %151 = vst.msk [vmem:[%s1 + $0x28] sm:$0xff] %vm145, %v134
    %152 = vst.msk [vmem:[%s1 + $0x30] sm:$0xff] %vm145, %v135
    %153 = vst.msk [vmem:[%s1 + $0x38] sm:$0xff] %vm145, %v136
    %154 = vst.msk [vmem:[%s1 + $0x40] sm:$0xff] %vm145, %v137
    %155 = vst.msk [vmem:[%s1 + $0x48] sm:$0xff] %vm145, %v138
    %156 = vst.msk [vmem:[%s1 + $0x50] sm:$0xff] %vm145, %v139
    %157 = vst.msk [vmem:[%s1 + $0x58] sm:$0xff] %vm145, %v140
    %158 = vst.msk [vmem:[%s1 + $0x60] sm:$0xff] %vm145, %v141
    %159 = vst.msk [vmem:[%s1 + $0x68] sm:$0xff] %vm145, %v142
    %160 = vst.msk [vmem:[%s1 + $0x70] sm:$0xff] %vm145, %v143
    %161 = vst.msk [vmem:[%s1 + $0x78] sm:$0xff] %vm145, %v144
    // Predicated region
    $region14: #{tpu_custom_call.1} parent=1 // pred_check
      %p162 = pneg %p24
    $region15: #{tpu_custom_call.1} parent=1 // pred_check_branch
      %164 = sbr.rel (%p162) target = $region17
    $region16: #{tpu_custom_call.1} parent=1 // pred_region
      %v165 = vld [vmem:[%s1] sm:$0xff]
      %v166 = vld [vmem:[%s1 + $0x8] sm:$0xff]
      %v167 = vld [vmem:[%s1 + $0x10] sm:$0xff]
      %v168 = vld [vmem:[%s1 + $0x18] sm:$0xff]
      %v169 = vld [vmem:[%s1 + $0x20] sm:$0xff]
      %v170 = vld [vmem:[%s1 + $0x28] sm:$0xff]
      %v171 = vld [vmem:[%s1 + $0x30] sm:$0xff]
      %v172 = vld [vmem:[%s1 + $0x38] sm:$0xff]
      %v173 = vld [vmem:[%s1 + $0x40] sm:$0xff]
      %v174 = vld [vmem:[%s1 + $0x48] sm:$0xff]
      %v175 = vld [vmem:[%s1 + $0x50] sm:$0xff]
      %v176 = vld [vmem:[%s1 + $0x58] sm:$0xff]
      %v177 = vld [vmem:[%s1 + $0x60] sm:$0xff]
      %v178 = vld [vmem:[%s1 + $0x68] sm:$0xff]
      %v179 = vld [vmem:[%s1 + $0x70] sm:$0xff]
      %v180 = vld [vmem:[%s1 + $0x78] sm:$0xff]
      %vm181 = vcmp.gt.f32.partialorder %v165, 0.0
      %vm182 = vcmp.gt.f32.partialorder %v166, 0.0
      %vm183 = vcmp.gt.f32.partialorder %v167, 0.0
      %vm184 = vcmp.gt.f32.partialorder %v168, 0.0
      %vm185 = vcmp.gt.f32.partialorder %v169, 0.0
      %vm186 = vcmp.gt.f32.partialorder %v170, 0.0
      %vm187 = vcmp.gt.f32.partialorder %v171, 0.0
      %vm188 = vcmp.gt.f32.partialorder %v172, 0.0
      %vm189 = vcmp.gt.f32.partialorder %v173, 0.0
      %vm190 = vcmp.gt.f32.partialorder %v174, 0.0
      %vm191 = vcmp.gt.f32.partialorder %v175, 0.0
      %vm192 = vcmp.gt.f32.partialorder %v176, 0.0
      %vm193 = vcmp.gt.f32.partialorder %v177, 0.0
      %vm194 = vcmp.gt.f32.partialorder %v178, 0.0
      %vm195 = vcmp.gt.f32.partialorder %v179, 0.0
      %vm196 = vcmp.gt.f32.partialorder %v180, 0.0
      %v197 = vrsqrt.pop %v165
      %v198 = vmul.f32 %v197, %v165
      %v199 = vmul.f32 %v198, %v197
      %v200 = vmul.f32 0.5, %v199
      %v201 = vsub.f32 1.5, %v200
      %v202 = vmul.f32 %v197, %v201
      %vm203 = vweird.f32 %v165
      %vm204 = vweird.f32 %v197
      %vm205 = vmor %vm203, %vm204
      %v206 = vsel %vm205, %v197, %v202
      %v207 = vrsqrt.pop %v166
      %v208 = vmul.f32 %v207, %v166
      %v209 = vmul.f32 %v208, %v207
      %v210 = vmul.f32 0.5, %v209
      %v211 = vsub.f32 1.5, %v210
      %v212 = vmul.f32 %v207, %v211
      %vm213 = vweird.f32 %v166
      %vm214 = vweird.f32 %v207
      %vm215 = vmor %vm213, %vm214
      %v216 = vsel %vm215, %v207, %v212
      %v217 = vrsqrt.pop %v167
      %v218 = vmul.f32 %v217, %v167
      %v219 = vmul.f32 %v218, %v217
      %v220 = vmul.f32 0.5, %v219
      %v221 = vsub.f32 1.5, %v220
      %v222 = vmul.f32 %v217, %v221
      %vm223 = vweird.f32 %v167
      %vm224 = vweird.f32 %v217
      %vm225 = vmor %vm223, %vm224
      %v226 = vsel %vm225, %v217, %v222
      %v227 = vrsqrt.pop %v168
      %v228 = vmul.f32 %v227, %v168
      %v229 = vmul.f32 %v228, %v227
      %v230 = vmul.f32 0.5, %v229
      %v231 = vsub.f32 1.5, %v230
      %v232 = vmul.f32 %v227, %v231
      %vm233 = vweird.f32 %v168
      %vm234 = vweird.f32 %v227
      %vm235 = vmor %vm233, %vm234
      %v236 = vsel %vm235, %v227, %v232
      %v237 = vrsqrt.pop %v169
      %v238 = vmul.f32 %v237, %v169
      %v239 = vmul.f32 %v238, %v237
      %v240 = vmul.f32 0.5, %v239
      %v241 = vsub.f32 1.5, %v240
      %v242 = vmul.f32 %v237, %v241
      %vm243 = vweird.f32 %v169
      %vm244 = vweird.f32 %v237
      %vm245 = vmor %vm243, %vm244
      %v246 = vsel %vm245, %v237, %v242
      %v247 = vrsqrt.pop %v170
      %v248 = vmul.f32 %v247, %v170
      %v249 = vmul.f32 %v248, %v247
      %v250 = vmul.f32 0.5, %v249
      %v251 = vsub.f32 1.5, %v250
      %v252 = vmul.f32 %v247, %v251
      %vm253 = vweird.f32 %v170
      %vm254 = vweird.f32 %v247
      %vm255 = vmor %vm253, %vm254
      %v256 = vsel %vm255, %v247, %v252
      %v257 = vrsqrt.pop %v171
      %v258 = vmul.f32 %v257, %v171
      %v259 = vmul.f32 %v258, %v257
      %v260 = vmul.f32 0.5, %v259
      %v261 = vsub.f32 1.5, %v260
      %v262 = vmul.f32 %v257, %v261
      %vm263 = vweird.f32 %v171
      %vm264 = vweird.f32 %v257
      %vm265 = vmor %vm263, %vm264
      %v266 = vsel %vm265, %v257, %v262
      %v267 = vrsqrt.pop %v172
      %v268 = vmul.f32 %v267, %v172
      %v269 = vmul.f32 %v268, %v267
      %v270 = vmul.f32 0.5, %v269
      %v271 = vsub.f32 1.5, %v270
      %v272 = vmul.f32 %v267, %v271
      %vm273 = vweird.f32 %v172
      %vm274 = vweird.f32 %v267
      %vm275 = vmor %vm273, %vm274
      %v276 = vsel %vm275, %v267, %v272
      %v277 = vrsqrt.pop %v173
      %v278 = vmul.f32 %v277, %v173
      %v279 = vmul.f32 %v278, %v277
      %v280 = vmul.f32 0.5, %v279
      %v281 = vsub.f32 1.5, %v280
      %v282 = vmul.f32 %v277, %v281
      %vm283 = vweird.f32 %v173
      %vm284 = vweird.f32 %v277
      %vm285 = vmor %vm283, %vm284
      %v286 = vsel %vm285, %v277, %v282
      %v287 = vrsqrt.pop %v174
      %v288 = vmul.f32 %v287, %v174
      %v289 = vmul.f32 %v288, %v287
      %v290 = vmul.f32 0.5, %v289
      %v291 = vsub.f32 1.5, %v290
      %v292 = vmul.f32 %v287, %v291
      %vm293 = vweird.f32 %v174
      %vm294 = vweird.f32 %v287
      %vm295 = vmor %vm293, %vm294
      %v296 = vsel %vm295, %v287, %v292
      %v297 = vrsqrt.pop %v175
      %v298 = vmul.f32 %v297, %v175
      %v299 = vmul.f32 %v298, %v297
      %v300 = vmul.f32 0.5, %v299
      %v301 = vsub.f32 1.5, %v300
      %v302 = vmul.f32 %v297, %v301
      %vm303 = vweird.f32 %v175
      %vm304 = vweird.f32 %v297
      %vm305 = vmor %vm303, %vm304
      %v306 = vsel %vm305, %v297, %v302
      %v307 = vrsqrt.pop %v176
      %v308 = vmul.f32 %v307, %v176
      %v309 = vmul.f32 %v308, %v307
      %v310 = vmul.f32 0.5, %v309
      %v311 = vsub.f32 1.5, %v310
      %v312 = vmul.f32 %v307, %v311
      %vm313 = vweird.f32 %v176
      %vm314 = vweird.f32 %v307
      %vm315 = vmor %vm313, %vm314
      %v316 = vsel %vm315, %v307, %v312
      %v317 = vrsqrt.pop %v177
      %v318 = vmul.f32 %v317, %v177
      %v319 = vmul.f32 %v318, %v317
      %v320 = vmul.f32 0.5, %v319
      %v321 = vsub.f32 1.5, %v320
      %v322 = vmul.f32 %v317, %v321
      %vm323 = vweird.f32 %v177
      %vm324 = vweird.f32 %v317
      %vm325 = vmor %vm323, %vm324
      %v326 = vsel %vm325, %v317, %v322
      %v327 = vrsqrt.pop %v178
      %v328 = vmul.f32 %v327, %v178
      %v329 = vmul.f32 %v328, %v327
      %v330 = vmul.f32 0.5, %v329
      %v331 = vsub.f32 1.5, %v330
      %v332 = vmul.f32 %v327, %v331
      %vm333 = vweird.f32 %v178
      %vm334 = vweird.f32 %v327
      %vm335 = vmor %vm333, %vm334
      %v336 = vsel %vm335, %v327, %v332
      %v337 = vrsqrt.pop %v179
      %v338 = vmul.f32 %v337, %v179
      %v339 = vmul.f32 %v338, %v337
      %v340 = vmul.f32 0.5, %v339
      %v341 = vsub.f32 1.5, %v340
      %v342 = vmul.f32 %v337, %v341
      %vm343 = vweird.f32 %v179
      %vm344 = vweird.f32 %v337
      %vm345 = vmor %vm343, %vm344
      %v346 = vsel %vm345, %v337, %v342
      %v347 = vrsqrt.pop %v180
      %v348 = vmul.f32 %v347, %v180
      %v349 = vmul.f32 %v348, %v347
      %v350 = vmul.f32 0.5, %v349
      %v351 = vsub.f32 1.5, %v350
      %v352 = vmul.f32 %v347, %v351
      %vm353 = vweird.f32 %v180
      %vm354 = vweird.f32 %v347
      %vm355 = vmor %vm353, %vm354
      %v356 = vsel %vm355, %v347, %v352
      %v357 = vsel %vm181, %v206, 0.0
      %v358 = vsel %vm182, %v216, 0.0
      %v359 = vsel %vm183, %v226, 0.0
      %v360 = vsel %vm184, %v236, 0.0
      %v361 = vsel %vm185, %v246, 0.0
      %v362 = vsel %vm186, %v256, 0.0
      %v363 = vsel %vm187, %v266, 0.0
      %v364 = vsel %vm188, %v276, 0.0
      %v365 = vsel %vm189, %v286, 0.0
      %v366 = vsel %vm190, %v296, 0.0
      %v367 = vsel %vm191, %v306, 0.0
      %v368 = vsel %vm192, %v316, 0.0
      %v369 = vsel %vm193, %v326, 0.0
      %v370 = vsel %vm194, %v336, 0.0
      %v371 = vsel %vm195, %v346, 0.0
      %v372 = vsel %vm196, %v356, 0.0
      %373 = vst.msk [vmem:[%s1] sm:$0xff] %vm145, %v357
      %374 = vst.msk [vmem:[%s1 + $0x8] sm:$0xff] %vm145, %v358
      %375 = vst.msk [vmem:[%s1 + $0x10] sm:$0xff] %vm145, %v359
      %376 = vst.msk [vmem:[%s1 + $0x18] sm:$0xff] %vm145, %v360
      %377 = vst.msk [vmem:[%s1 + $0x20] sm:$0xff] %vm145, %v361
      %378 = vst.msk [vmem:[%s1 + $0x28] sm:$0xff] %vm145, %v362
      %379 = vst.msk [vmem:[%s1 + $0x30] sm:$0xff] %vm145, %v363
      %380 = vst.msk [vmem:[%s1 + $0x38] sm:$0xff] %vm145, %v364
      %381 = vst.msk [vmem:[%s1 + $0x40] sm:$0xff] %vm145, %v365
      %382 = vst.msk [vmem:[%s1 + $0x48] sm:$0xff] %vm145, %v366
      %383 = vst.msk [vmem:[%s1 + $0x50] sm:$0xff] %vm145, %v367
      %384 = vst.msk [vmem:[%s1 + $0x58] sm:$0xff] %vm145, %v368
      %385 = vst.msk [vmem:[%s1 + $0x60] sm:$0xff] %vm145, %v369
      %386 = vst.msk [vmem:[%s1 + $0x68] sm:$0xff] %vm145, %v370
      %387 = vst.msk [vmem:[%s1 + $0x70] sm:$0xff] %vm145, %v371
      %388 = vst.msk [vmem:[%s1 + $0x78] sm:$0xff] %vm145, %v372
    $region17: #{tpu_custom_call.1} parent=1 // pred_fallthru
      _
    // Predicated region
    $region18: #{tpu_custom_call.1} parent=1 // pred_check
      _
    $region19: #{tpu_custom_call.1} parent=1 // pred_check_branch
      %390 = sbr.rel (0) target = $region21
    $region20: #{tpu_custom_call.1} parent=1 // pred_region
      _
    $region21: #{tpu_custom_call.1} parent=1 // pred_fallthru
      _
    // Predicated region
    $region22: #{tpu_custom_call.1} parent=1 // pred_check
      _
    $region23: #{tpu_custom_call.1} parent=1 // pred_check_branch
      %392 = sbr.rel (0) target = $region25
    $region24: #{tpu_custom_call.1} parent=1 // pred_region
      _
    $region25: #{tpu_custom_call.1} parent=1 // pred_fallthru
      _
    %393 = vsyncpa [#allocation3], 1

</llo_original>
